<compile_context>
chip_gen: v7x
topology: tpu7x:2x2x1
jax: 0.10.0
libtpu: 0.0.40
codegen_flags: <defaults>
</compile_context>

<pallas_src>
import math

import jax
import jax.numpy as jnp
from jax.experimental import pallas as pl
from jax.experimental.pallas import tpu as pltpu

_LANE = 128
_MIN_ROWS = 32                 # covers sublane packing: f32 (8), bf16 (16), int8/fp8 (32)
_BYPASS_BYTES = 512 * 1024     # below this, pallas_call overhead > the work


def _static_scale_kernel(x_ref, w_ref, o_ref):
    # x_ref: (tile_m, tile_f), w_ref: (1, tile_f) broadcast over rows.
    o_ref[...] = x_ref[...] * w_ref[...]


def _round_down(n, m):
    return (n // m) * m


def _hw_config():
    """Return (target_block_bytes, vmem_limit_bytes) for the current TPU generation."""
    try:
        kind = jax.devices()[0].device_kind.lower()
    except Exception:
        kind = ""
    if "v7" in kind:
        # ~3.2 TB/s HBM: 8 MiB blocks keep per-step overhead ~5-7%.
        # 4 x 8 MiB double buffers = 32 MiB; raise scoped limit, stay < 64 MiB/TC.
        return 8 * 1024 * 1024, 48 * 1024 * 1024
    if "v6" in kind:
        # ~1.4 TB/s HBM, 128 MiB VMEM: 8 MiB blocks are free throughput.
        return 8 * 1024 * 1024, 64 * 1024 * 1024
    if "v5" in kind:
        # v5e default scoped VMEM is 16 MiB; 4 MiB blocks need the limit raised.
        return 4 * 1024 * 1024, 24 * 1024 * 1024
    # Unknown chip: stay inside the most conservative default scoped limit.
    return 2 * 1024 * 1024, None


def static_scale(x: jax.Array, weight: jax.Array, *,
                 force_kernel: bool = False, donate: bool = False) -> jax.Array:
    """Multiply each feature (last dim) of x by a fixed per-feature scale."""
    features = x.shape[-1]
    assert weight.shape == (features,)

    # One dtype convention for both paths (kernel and bypass): result is x.dtype.
    weight = weight.astype(x.dtype)

    nbytes = x.size * x.dtype.itemsize
    if x.size == 0 or (not force_kernel and nbytes < _BYPASS_BYTES):
        return x * weight

    orig_shape = x.shape
    x2d = x.reshape(-1, features)                 # (M, F)
    m_rows = x2d.shape[0]
    itemsize = x.dtype.itemsize

    # Lane-dense folding for small F, only when it divides M exactly (no pad pass).
    fold_k = 1
    if features < _LANE and _LANE % features == 0:
        fold_k = math.gcd(_LANE // features, m_rows)
    f_eff = fold_k * features
    m_fold = m_rows // fold_k
    x_eff = x2d.reshape(m_fold, f_eff)
    w_eff = (jnp.tile(weight, fold_k) if fold_k > 1 else weight).reshape(1, f_eff)

    target_block_bytes, vmem_limit = _hw_config()

    # Pick (tile_m, tile_f).  Tile the feature axis only when even a _MIN_ROWS-row
    # block would exceed the target (very wide F) -> bounds VMEM on every chip.
    row_bytes = f_eff * itemsize
    if row_bytes * _MIN_ROWS > target_block_bytes and f_eff > _LANE:
        tile_f = max(_LANE, _round_down(target_block_bytes // (_MIN_ROWS * itemsize), _LANE))
        tile_f = min(tile_f, _round_down(f_eff, _LANE))
        tile_m = min(_MIN_ROWS, m_fold)
    else:
        tile_f = f_eff
        if m_fold <= _MIN_ROWS:
            tile_m = m_fold                      # single full-extent row block
        else:
            tile_m = max(_MIN_ROWS, _round_down(target_block_bytes // row_bytes, _MIN_ROWS))
            tile_m = min(tile_m, _round_down(m_fold, _MIN_ROWS))

    grid_m = pl.cdiv(m_fold, tile_m)
    grid_f = pl.cdiv(f_eff, tile_f)

    if grid_f > 1:
        grid = (grid_m, grid_f)
        x_spec = pl.BlockSpec((tile_m, tile_f), lambda i, j: (i, j))
        w_spec = pl.BlockSpec((1, tile_f), lambda i, j: (0, j))
        o_spec = pl.BlockSpec((tile_m, tile_f), lambda i, j: (i, j))
        dims = ("parallel", "parallel")
    else:
        grid = (grid_m,)
        x_spec = pl.BlockSpec((tile_m, f_eff), lambda i: (i, 0))
        w_spec = pl.BlockSpec((1, f_eff), lambda i: (0, 0))       # loop-invariant scale
        o_spec = pl.BlockSpec((tile_m, f_eff), lambda i: (i, 0))
        dims = ("parallel",)

    out = pl.pallas_call(
        _static_scale_kernel,
        out_shape=jax.ShapeDtypeStruct((m_fold, f_eff), x.dtype),
        grid_spec=pltpu.PrefetchScalarGridSpec(
            num_scalar_prefetch=0,
            grid=grid,
            in_specs=[x_spec, w_spec],
            out_specs=o_spec,
        ),
        compiler_params=pltpu.CompilerParams(
            dimension_semantics=dims,            # row/feature blocks shard across TCs on v7x
            vmem_limit_bytes=vmem_limit,
        ),
        input_output_aliases=({0: 0} if donate else {}),
    )(x_eff, w_eff)

    # No padding was added, so a pure reshape restores the original shape.
    return out.reshape(orig_shape)


if __name__ == "__main__":
    key = jax.random.PRNGKey(0)
    k1, k2, k3 = jax.random.split(key, 3)

    # 1) Small shape matching the module example; buffer init is ones.
    batch, seq, features = 2, 8, 32
    x_small = jax.random.normal(k1, (batch, seq, features), dtype=jnp.float32)
    weight_small = jnp.ones((features,), dtype=jnp.float32)      # register_buffer('weight', ones)

    y_bypass = static_scale(x_small, weight_small)                       # XLA bypass path
    y_kernel = static_scale(x_small, weight_small, force_kernel=True)    # kernel, lane-folded 32 -> 128
    jax.block_until_ready((y_bypass, y_kernel))
    ref_small = x_small * weight_small
    assert y_kernel.shape == x_small.shape and y_kernel.dtype == x_small.dtype
    assert jnp.allclose(y_bypass, ref_small, atol=1e-6, rtol=1e-6)
    assert jnp.allclose(y_kernel, ref_small, atol=1e-6, rtol=1e-6)

    # 2) Larger shape exercising multi-block pipelining and the masked ragged last
    #    row block (no wrapper-side padding), with a non-trivial scale.
    b2, s2, f2 = 16, 1030, 256
    x_big = jax.random.normal(k2, (b2, s2, f2), dtype=jnp.float32)
    weight_big = (jnp.arange(f2, dtype=jnp.float32) % 7.0) * 0.25 + 0.5
    y_big = static_scale(x_big, weight_big)
    jax.block_until_ready(y_big)
    assert jnp.allclose(y_big, x_big * weight_big, atol=1e-6, rtol=1e-6)

    # 3) bf16 input with the module's f32 buffer: weight is cast, output stays bf16.
    x_bf = jax.random.normal(k3, (batch, seq, features), dtype=jnp.bfloat16)
    y_bf = static_scale(x_bf, weight_small, force_kernel=True)
    jax.block_until_ready(y_bf)
    assert y_bf.dtype == jnp.bfloat16
    assert jnp.allclose(y_bf.astype(jnp.float32),
                        x_bf.astype(jnp.float32) * weight_small, atol=1e-2, rtol=1e-2)

    print("KERNEL_OK")
</pallas_src>

<mosaic_0001>
module attributes {stable_mosaic.version = 11 : i64} {
  func.func @_static_scale_kernel(%arg0: i32, %arg1: memref<4x128xf32, #tpu.memory_space<vmem>>, %arg2: memref<1x128xf32, #tpu.memory_space<vmem>>, %arg3: memref<4x128xf32, #tpu.memory_space<vmem>>) attributes {dimension_semantics = [#tpu.dimension_semantics<parallel>], iteration_bounds = array<i64: 1>, scalar_prefetch = 0 : i64, scratch_operands = 0 : i64, tpu.core_type = #tpu.core_type<tc>, window_params = [{transform_indices = @transform_0, window_bounds = array<i64: 4, 128>}, {pipeline_mode = #tpu.pipeline_mode<synchronous>, transform_indices = @transform_1, window_bounds = array<i64: 1, 128>}, {transform_indices = @transform_2, window_bounds = array<i64: 4, 128>}]} {
    %c0 = arith.constant 0 : index
    %c0_0 = arith.constant 0 : index
    %0 = vector.load %arg1[%c0, %c0_0] : memref<4x128xf32, #tpu.memory_space<vmem>>, vector<4x128xf32>
    %c0_1 = arith.constant 0 : index
    %c0_2 = arith.constant 0 : index
    %1 = vector.load %arg2[%c0_1, %c0_2] : memref<1x128xf32, #tpu.memory_space<vmem>>, vector<1x128xf32>
    %2 = vector.broadcast %1 : vector<1x128xf32> to vector<4x128xf32>
    %3 = arith.mulf %0, %2 : vector<4x128xf32>
    %c0_3 = arith.constant 0 : index
    %c0_4 = arith.constant 0 : index
    %4 = vector.load %arg3[%c0_3, %c0_4] : memref<4x128xf32, #tpu.memory_space<vmem>>, vector<4x128xf32>
    tpu.vector_store %arg3[%c0_3, %c0_4], %3 {strides = array<i32>} : memref<4x128xf32, #tpu.memory_space<vmem>>, vector<4x128xf32>,
    return
  }
  func.func @transform_0(%arg0: i32) -> (i32, i32) {
    %c0_i32 = arith.constant 0 : i32
    %c0_i32_0 = arith.constant 0 : i32
    return %arg0, %c0_i32 : i32, i32
  }
  func.func @transform_1(%arg0: i32) -> (i32, i32) {
    %c0_i32 = arith.constant 0 : i32
    %c0_i32_0 = arith.constant 0 : i32
    %c0_i32_1 = arith.constant 0 : i32
    return %c0_i32, %c0_i32_0 : i32, i32
  }
  func.func @transform_2(%arg0: i32) -> (i32, i32) {
    %c0_i32 = arith.constant 0 : i32
    %c0_i32_0 = arith.constant 0 : i32
    return %arg0, %c0_i32 : i32, i32
  }
}

</mosaic_0001>

<llo_original>
// kernel: tpu_custom_call.1
$region0: #{tpu_custom_call.1}
  #allocation0 [shape = 'u32[]', space=smem, size = 0x4, offset = 0x4, fixed_abs, tag = 'smem constant byte address 0x4 - core index']
  #allocation1 [shape = 'u32[144,128]{1,0:T(1,128)}', space=vmem, size = 0x12000, scoped, tag = 'internal scratch']
  %s0 = inlined_call_operand.hbm [shape: f32[4,128], index: 0, kind: input, shape index: {}]
  %s1 = inlined_call_operand.vmem [shape: f32[1,128], index: 1, kind: input, shape index: {}]
  %s2 = inlined_call_operand.hbm [shape: f32[4,128], index: 2, kind: output, shape index: {}]
  %s3 = sld [smem:[#allocation0]]
  $region22: #{tpu_custom_call.1} parent=0
    _
  %s5 = ssub.s32 1, %s3
  %s6 = scalar_select 0, %s5, %s3
  $region1: #{tpu_custom_call.1} parent=0
    #allocation2 [shape = 'u8[2048]{0}', space=vmem, size = 0x800, scoped, tag = 'input window, operand 0, single buffered']
    #allocation3 [shape = 's32[1]{0}', space=sflag, size = 0x4, scoped, tag = 'scoped memory for tpu_custom_call.1']
    #allocation4 [shape = 's32[1]{0}', space=sflag, size = 0x4, scoped, tag = 'scoped memory for tpu_custom_call.1']
    #allocation5 [shape = 'u8[2048]{0}', space=vmem, size = 0x800, scoped, tag = 'output window, operand 0, single buffered']
    %7 = vsyncpa [#allocation3], 0
    %8 = vsyncpa [#allocation4], 0
    // Predicated region
    $region2: #{tpu_custom_call.1} parent=1 // pred_check
      _
    $region3: #{tpu_custom_call.1} parent=1 // pred_check_branch
      %10 = sbr.rel (0) target = $region5
    $region4: #{tpu_custom_call.1} parent=1 // pred_region
      %s12 = ssub.s32 64, 64
      %13 = vsyncadd [#allocation3], %s12
      %s15 = sshll.u32 [#allocation2], 4
      %s16 = int_to_ptr.vmem [resolvable:$true] %s15
      %18 = dma.hbm_to_vmem [thread:$0]  %s0, 64, %s16, [#allocation3]
    $region5: #{tpu_custom_call.1} parent=1 // pred_fallthru
      _
    // Predicated region
    $region6: #{tpu_custom_call.1} parent=1 // pred_check
      _
    $region7: #{tpu_custom_call.1} parent=1 // pred_check_branch
      %20 = sbr.rel (0) target = $region9
    $region8: #{tpu_custom_call.1} parent=1 // pred_region
      _
    $region9: #{tpu_custom_call.1} parent=1 // pred_fallthru
      _
    // Predicated region
    $region10: #{tpu_custom_call.1} parent=1 // pred_check
      _
    $region11: #{tpu_custom_call.1} parent=1 // pred_check_branch
      %22 = sbr.rel (0) target = $region13
    $region12: #{tpu_custom_call.1} parent=1 // pred_region
      %23 = dma.done [#allocation3], 64
    $region13: #{tpu_custom_call.1} parent=1 // pred_fallthru
      _
    %v24 = vld [vmem:[#allocation2] sm:$0xf]
    %v25 = vld [vmem:[%s1] sm:$0x1]
    %v27 = vlaneseq
    %v28 = vshrl.u32 %v27, 7
    %v29 = vsub.s32 0, %v28
    %v30 = vrot.slane %v25, %v29
    %v32 = vmul.f32 %v24, %v30
    %33 = vst [vmem:[#allocation5] sm:$0xf] %v32
    // Predicated region
    $region14: #{tpu_custom_call.1} parent=1 // pred_check
      _
    $region15: #{tpu_custom_call.1} parent=1 // pred_check_branch
      %35 = sbr.rel (0) target = $region17
    $region16: #{tpu_custom_call.1} parent=1 // pred_region
      %s37 = ssub.s32 64, 64
      %38 = vsyncadd [#allocation4], %s37
      %s40 = sshll.u32 [#allocation5], 4
      %s41 = int_to_ptr.vmem [resolvable:$true] %s40
      %43 = dma.vmem_to_hbm [thread:$0]  %s41, 64, %s2, [#allocation4]
    $region17: #{tpu_custom_call.1} parent=1 // pred_fallthru
      _
    // Predicated region
    $region18: #{tpu_custom_call.1} parent=1 // pred_check
      _
    $region19: #{tpu_custom_call.1} parent=1 // pred_check_branch
      %45 = sbr.rel (0) target = $region21
    $region20: #{tpu_custom_call.1} parent=1 // pred_region
      %46 = dma.done [#allocation4], 64
    $region21: #{tpu_custom_call.1} parent=1 // pred_fallthru
      _
    %47 = vsyncpa [#allocation3], 1
    %48 = vsyncpa [#allocation4], 1

</llo_original>
